<compile_context>
chip_gen: v5e
topology: v5e:2x2
jax: 0.10.0
libtpu: 0.0.40
codegen_flags: <defaults>
</compile_context>

<pallas_src>
import jax
import jax.numpy as jnp
from jax.experimental import pallas as pl
from jax.experimental.pallas import tpu as pltpu


def _round_up(x, m):
    return ((x + m - 1) // m) * m


def _pad_dim(d):
    """Padded extent for a matmul dim: multiple of 512 for large dims (so tiles
    never collapse to 128 for real hidden/vocab sizes), else multiple of 128."""
    if d >= 4096:
        return _round_up(d, 512)
    return _round_up(d, 128)


def _pick_tile(dim_padded, max_tile):
    """Largest multiple of 128 that divides dim_padded and is <= max_tile."""
    best = 128
    t = 128
    limit = min(dim_padded, max(max_tile, 128))
    while t <= limit:
        if dim_padded % t == 0:
            best = t
        t += 128
    return best


def _out_proj_kernel_resident(h_ref, w_ref, b_ref, o_ref):
    """f32 output: accumulate directly into the resident output block.

    h_ref: (tm, Hp) K-resident hidden slab (native dtype, fetched once per row
           block); w_ref: (tk, tn) bf16 weight tile; b_ref: (1, tn) f32 bias row.
    """
    k = pl.program_id(2)
    tk = w_ref.shape[0]

    @pl.when(k == 0)
    def _init():
        o_ref[...] = jnp.zeros_like(o_ref)

    h_blk = h_ref[:, pl.ds(pl.multiple_of(k * tk, 128), tk)].astype(jnp.bfloat16)
    o_ref[...] += jnp.dot(h_blk, w_ref[...], preferred_element_type=jnp.float32)

    @pl.when(k == pl.num_programs(2) - 1)
    def _finalize():
        o_ref[...] += b_ref[...]          # (1, tn) row broadcast over tm rows


def _out_proj_kernel_scratch(h_ref, w_ref, b_ref, o_ref, acc_ref):
    """Narrow output dtype: accumulate in f32 scratch, cast once on the last k."""
    k = pl.program_id(2)
    tk = w_ref.shape[0]

    @pl.when(k == 0)
    def _init():
        acc_ref[...] = jnp.zeros_like(acc_ref)

    h_blk = h_ref[:, pl.ds(pl.multiple_of(k * tk, 128), tk)].astype(jnp.bfloat16)
    acc_ref[...] += jnp.dot(h_blk, w_ref[...], preferred_element_type=jnp.float32)

    @pl.when(k == pl.num_programs(2) - 1)
    def _finalize():
        o_ref[...] = (acc_ref[...] + b_ref[...]).astype(o_ref.dtype)


_TM_CAP = 512                      # large-N row block: MXU-bound on v6e/v7x
_VMEM_BUDGET = 44 * 1024 * 1024    # shrink-to-fit target (v7x: 64 MiB / TC)
_VMEM_LIMIT_CAP = 48 * 1024 * 1024  # leave headroom for compiler scratch/sems


@jax.jit
def output_layer_matmul(hidden2d, w_t, bias2d, lang):
    """hidden2d: (N, H) activations (dtype defines output dtype);
    w_t: (Hp, Vp) bf16 pre-transposed, zero-padded projection weight;
    bias2d: (L, V) f32 bias table (L == 1 for the plain Linear bias);
    lang: int32 scalar selecting the bias row (0 when bias_vectors == 1)."""
    out_dtype = hidden2d.dtype
    N, H = hidden2d.shape
    Hp, Vp = w_t.shape
    L, V = bias2d.shape

    # Pre-select + pad the bias row: one clean (1, Vp) unmasked DMA stream,
    # no strided sublane access over the tiny (L, V) table.
    bias_row = jax.lax.dynamic_slice_in_dim(bias2d, lang, 1, axis=0)
    if V != Vp:
        bias_row = jnp.pad(bias_row, ((0, 0), (0, Vp - V)))

    # --- tile selection (shapes are static under jit) ------------------------
    # Balanced tm: same row-block count the cap would give, but the last block
    # is not mostly zero padding.
    n_row_blocks = -(-max(N, 1) // _TM_CAP)
    tm = min(_TM_CAP, _round_up(-(-max(N, 1) // n_row_blocks), 16))
    tk = _pick_tile(Hp, 2048)   # keep tk large: f32 accumulate vst stays off
                                # the critical VLIW slot on v6e/v7x
    tn = _pick_tile(Vp, 1024)

    resident = jnp.dtype(out_dtype) == jnp.dtype(jnp.float32)
    kernel = _out_proj_kernel_resident if resident else _out_proj_kernel_scratch
    kernel_out_dtype = jnp.float32 if resident else out_dtype
    out_item = jnp.dtype(kernel_out_dtype).itemsize

    # Hidden stays in its native dtype (no extra XLA pass; the per-tile bf16
    # cast happens on the VPU, which has huge slack).  Only for very wide H do
    # we take a one-off wrapper cast so the K-resident slab stays small.
    h_in = hidden2d
    if h_in.dtype != jnp.bfloat16 and tm * Hp * h_in.dtype.itemsize > 8 * 1024 * 1024:
        h_in = h_in.astype(jnp.bfloat16)
    h_item = jnp.dtype(h_in.dtype).itemsize

    def vmem_est(tm_, tk_, tn_):
        return (2 * (tm_ * Hp * h_item          # K-resident hidden slab
                     + tk_ * tn_ * 2            # bf16 weight tile
                     + 8 * tn_ * 4              # bias row
                     + tm_ * tn_ * out_item)    # output block
                + (0 if resident else tm_ * tn_ * 4))

    # Shrink to fit the (v7x-safe) VMEM budget.
    while vmem_est(tm, tk, tn) > _VMEM_BUDGET:
        if 2 * tm * Hp * h_item > _VMEM_BUDGET // 2 and tm > 16:
            tm = max(16, _round_up(tm // 2, 16))
        elif tn > 128:
            tn = _pick_tile(Vp, tn // 2)
        elif tk > 128:
            tk = _pick_tile(Hp, tk // 2)
        elif tm > 16:
            tm = max(16, _round_up(tm // 2, 16))
        else:
            break

    Np = _round_up(max(N, 1), tm)

    # v7x megacore: when there is only one row block (decode), make sure the
    # vocab "parallel" axis still has >= 2 blocks so both TensorCores work.
    if Np // tm == 1 and Vp // tn < 2 and Vp >= 256:
        tn = _pick_tile(Vp, Vp // 2)

    # --- pad the activations only when the shapes require it -----------------
    if (Np, Hp) != (N, H):
        h_in = jnp.pad(h_in, ((0, Np - N), (0, Hp - H)))

    grid = (Np // tm, Vp // tn, Hp // tk)
    scratch = [] if resident else [pltpu.VMEM((tm, tn), jnp.float32)]

    grid_spec = pltpu.PrefetchScalarGridSpec(
        num_scalar_prefetch=0,
        grid=grid,
        in_specs=[
            # K-resident hidden slab: block index depends only on i, so it is
            # DMA'd once per row block and reused for every (j, k).
            pl.BlockSpec((tm, Hp), lambda i, j, k: (i, 0)),
            # weight tile: reduction slab k, vocab tile j (the only big stream)
            pl.BlockSpec((tk, tn), lambda i, j, k: (k, j)),
            # pre-selected bias row
            pl.BlockSpec((1, tn), lambda i, j, k: (0, j)),
        ],
        out_specs=pl.BlockSpec((tm, tn), lambda i, j, k: (i, j)),
        scratch_shapes=scratch,
    )

    est_vmem = vmem_est(tm, tk, tn)
    vmem_limit = int(min(_VMEM_LIMIT_CAP, max(32 * 1024 * 1024, 2 * est_vmem)))

    n_row = Np // tm
    cost = pl.CostEstimate(
        flops=2 * Np * Hp * Vp,
        transcendentals=0,
        bytes_accessed=(n_row * Hp * Vp * 2        # weight re-streamed per row block
                        + Np * Hp * h_item
                        + Np * Vp * out_item
                        + Vp * 4),
    )

    out = pl.pallas_call(
        kernel,
        out_shape=jax.ShapeDtypeStruct((Np, Vp), kernel_out_dtype),
        grid_spec=grid_spec,
        compiler_params=pltpu.CompilerParams(
            dimension_semantics=("parallel", "parallel", "arbitrary"),
            vmem_limit_bytes=vmem_limit,
        ),
        cost_estimate=cost,
    )(h_in, w_t, bias_row)

    # kernel_out_dtype always equals out_dtype here, so only the slice is
    # conditionally needed (skipped entirely for aligned shapes).
    if (Np, Vp) != (N, V):
        out = out[:N, :V]
    return out


class OutputLayerPallas:
    """JAX/Pallas port of onmt OutputLayer. Deterministic synthetic init."""

    def __init__(self, hidden_size, vocab_size, transform=None, bias_vectors=1,
                 key=jax.random.PRNGKey(0), dtype=jnp.float32):
        self.hidden_size = hidden_size
        self.vocab_size = vocab_size
        self.bias_vectors = bias_vectors
        self.transform = transform

        k_w, k_b, k_mb = jax.random.split(key, 3)
        bound = 1.0 / (hidden_size ** 0.5)
        # nn.Linear(hidden, vocab): weight (V, H), bias (V,)
        self.weight = jax.random.uniform(
            k_w, (vocab_size, hidden_size), dtype, -bound, bound)
        if bias_vectors == 1:
            self.bias = jax.random.uniform(k_b, (vocab_size,), dtype, -bound, bound)
            self.multi_bias_weight = None
        else:
            self.bias = jnp.zeros((vocab_size,), dtype)       # Linear(bias=False)
            # MultilingualBias.reset_parameters: uniform_(weight) in [0, 1)
            self.multi_bias_weight = jax.random.uniform(
                k_mb, (bias_vectors, vocab_size), dtype, 0.0, 1.0)

        # --- kernel-friendly layouts, computed once --------------------------
        # Large dims padded to a multiple of 512 so tk/tn never collapse to 128
        # (e.g. V=50257 -> 50688); small dims keep 128 padding (no weight bloat).
        Hp = _pad_dim(hidden_size)
        Vp = _pad_dim(vocab_size)
        w_t = jnp.zeros((Hp, Vp), jnp.bfloat16)
        w_t = w_t.at[:hidden_size, :vocab_size].set(
            self.weight.T.astype(jnp.bfloat16))
        self._w_t = w_t                                        # (Hp, Vp) bf16
        # TODO(synk): offer int8 (v5e/v6e) / fp8 (v7x, no int MXU datapath)
        # weight storage with per-column scales folded into the bias for the
        # weight-bandwidth-bound decode regime.
        if bias_vectors == 1:
            self._bias2d = self.bias.reshape(1, vocab_size).astype(jnp.float32)
        else:
            self._bias2d = self.multi_bias_weight.astype(jnp.float32)  # (L, V)

    def __call__(self, hidden, language=None, transform=False):
        lead = hidden.shape[:-1]
        h2d = hidden.reshape(-1, self.hidden_size)

        if self.bias_vectors > 1:
            assert language is not None
            # TODO(synk): per-token language tensors are not supported; a single
            # language index per call is assumed (one bias row per call).
            lang = jnp.asarray(language, dtype=jnp.int32).reshape(())
        else:
            lang = jnp.zeros((), jnp.int32)          # row 0 of the (1, V) bias

        out = output_layer_matmul(h2d, self._w_t, self._bias2d, lang)
        out = out.reshape(*lead, self.vocab_size)

        if transform:
            # transform is an arbitrary module passed at construction; applied
            # as plain-JAX glue over the kernel output.
            # TODO(synk): when transform is log_softmax, fuse per-(i,j) row-max /
            # sum-exp partials into the kernel epilogue (masking padded vocab
            # columns to -inf) to avoid round-tripping the (N, V) logits via HBM.
            out = self.transform(out)
        return out


def _reference(hidden, layer, language=None, transform=False):
    # Emulate the kernel's bf16-in / f32-accumulate matmul for a tight check.
    h = hidden.astype(jnp.bfloat16).astype(jnp.float32)
    w = layer.weight.astype(jnp.bfloat16).astype(jnp.float32)
    out = h @ w.T
    if layer.bias_vectors == 1:
        out = out + layer.bias.astype(jnp.float32)
    else:
        out = out + layer.multi_bias_weight[language].astype(jnp.float32)
    out = out.astype(hidden.dtype)
    if transform:
        out = layer.transform(out.astype(jnp.float32))
    return out


if __name__ == "__main__":
    # batch, seq, hidden, vocab, bias_vectors -- H and V are intentionally NOT
    # multiples of 128 so the padding path is exercised.
    B, S, H, V, L = 2, 8, 96, 200, 3

    key = jax.random.PRNGKey(0)
    k_h, k_p = jax.random.split(key)
    hidden = jax.random.normal(k_h, (B, S, H), jnp.float32)

    transform_fn = lambda x: jax.nn.log_softmax(x, axis=-1)

    # --- multilingual-bias path (bias_vectors > 1), f32 output ----------------
    layer = OutputLayerPallas(H, V, transform=transform_fn, bias_vectors=L, key=k_p)
    language = 1
    out = jax.block_until_ready(layer(hidden, language=language, transform=True))
    ref = _reference(hidden, layer, language, transform=True)
    assert out.shape == (B, S, V), out.shape
    err = float(jnp.max(jnp.abs(out - ref)))
    assert jnp.allclose(out, ref, atol=2e-2, rtol=2e-2), err

    # --- plain Linear + bias path (bias_vectors == 1), bf16 output ------------
    layer1 = OutputLayerPallas(H, V, transform=transform_fn, bias_vectors=1, key=k_p)
    hidden_bf16 = hidden.astype(jnp.bfloat16)
    out1 = jax.block_until_ready(layer1(hidden_bf16))
    ref1 = _reference(hidden_bf16, layer1, None, transform=False)
    err1 = float(jnp.max(jnp.abs(out1.astype(jnp.float32) - ref1.astype(jnp.float32))))
    assert jnp.allclose(out1.astype(jnp.float32), ref1.astype(jnp.float32),
                        atol=5e-2, rtol=5e-2), err1

    print("KERNEL_OK")
</pallas_src>

<mosaic_0001>
module attributes {stable_mosaic.version = 11 : i64} {
  func.func @_out_proj_kernel_resident(%arg0: i32, %arg1: i32, %arg2: i32, %arg3: memref<16x128xf32, #tpu.memory_space<vmem>>, %arg4: memref<128x128xbf16, #tpu.memory_space<vmem>>, %arg5: memref<1x128xf32, #tpu.memory_space<vmem>>, %arg6: memref<16x128xf32, #tpu.memory_space<vmem>>) attributes {dimension_semantics = [#tpu.dimension_semantics<parallel>, #tpu.dimension_semantics<parallel>, #tpu.dimension_semantics<arbitrary>], iteration_bounds = array<i64: 1, 2, 1>, scalar_prefetch = 0 : i64, scratch_operands = 0 : i64, tpu.core_type = #tpu.core_type<tc>, window_params = [{transform_indices = @transform_0, window_bounds = array<i64: 16, 128>}, {transform_indices = @transform_1, window_bounds = array<i64: 128, 128>}, {transform_indices = @transform_2, window_bounds = array<i64: 1, 128>}, {transform_indices = @transform_3, window_bounds = array<i64: 16, 128>}]} {
    %c0_i32 = arith.constant 0 : i32
    %0 = arith.cmpi eq, %arg2, %c0_i32 : i32
    %1 = arith.extui %0 : i1 to i32
    %c0_i32_0 = arith.constant 0 : i32
    %2 = arith.cmpi ne, %1, %c0_i32_0 : i32
    scf.if %2 {
      %cst_9 = arith.constant 0.000000e+00 : f32
      %16 = vector.broadcast %cst_9 : f32 to vector<16x128xf32>
      %c0_10 = arith.constant 0 : index
      %c0_11 = arith.constant 0 : index
      %17 = vector.load %arg6[%c0_10, %c0_11] : memref<16x128xf32, #tpu.memory_space<vmem>>, vector<16x128xf32>
      tpu.vector_store %arg6[%c0_10, %c0_11], %16 {strides = array<i32>} : memref<16x128xf32, #tpu.memory_space<vmem>>, vector<16x128xf32>,
    } else {
    }
    %c128_i32 = arith.constant 128 : i32
    %3 = arith.muli %arg2, %c128_i32 : i32
    %4 = tpu.assume_multiple %3, 128 : i32
    %c0 = arith.constant 0 : index
    %5 = arith.index_cast %4 : i32 to index
    %6 = vector.load %arg3[%c0, %5] : memref<16x128xf32, #tpu.memory_space<vmem>>, vector<16x128xf32>
    %7 = arith.truncf %6 : vector<16x128xf32> to vector<16x128xbf16>
    %c0_1 = arith.constant 0 : index
    %c0_2 = arith.constant 0 : index
    %8 = vector.load %arg6[%c0_1, %c0_2] : memref<16x128xf32, #tpu.memory_space<vmem>>, vector<16x128xf32>
    %c0_3 = arith.constant 0 : index
    %c0_4 = arith.constant 0 : index
    %9 = vector.load %arg4[%c0_3, %c0_4] : memref<128x128xbf16, #tpu.memory_space<vmem>>, vector<128x128xbf16>
    %cst = arith.constant dense<0.000000e+00> : vector<16x128xf32>
    %10 = tpu.matmul %7, %9, %cst {dimension_numbers = #tpu.dot_dimension_numbers<[1], [0], [0], [1], [0, 0, 1, 1], [], []>} : vector<16x128xbf16>, vector<128x128xbf16>, vector<16x128xf32> -> vector<16x128xf32>
    %11 = arith.addf %8, %10 : vector<16x128xf32>
    %c0_5 = arith.constant 0 : index
    %c0_6 = arith.constant 0 : index
    %12 = vector.load %arg6[%c0_5, %c0_6] : memref<16x128xf32, #tpu.memory_space<vmem>>, vector<16x128xf32>
    tpu.vector_store %arg6[%c0_5, %c0_6], %11 {strides = array<i32>} : memref<16x128xf32, #tpu.memory_space<vmem>>, vector<16x128xf32>,
    %c0_i32_7 = arith.constant 0 : i32
    %13 = arith.cmpi eq, %arg2, %c0_i32_7 : i32
    %14 = arith.extui %13 : i1 to i32
    %c0_i32_8 = arith.constant 0 : i32
    %15 = arith.cmpi ne, %14, %c0_i32_8 : i32
    scf.if %15 {
      %c0_9 = arith.constant 0 : index
      %c0_10 = arith.constant 0 : index
      %16 = vector.load %arg6[%c0_9, %c0_10] : memref<16x128xf32, #tpu.memory_space<vmem>>, vector<16x128xf32>
      %c0_11 = arith.constant 0 : index
      %c0_12 = arith.constant 0 : index
      %17 = vector.load %arg5[%c0_11, %c0_12] : memref<1x128xf32, #tpu.memory_space<vmem>>, vector<1x128xf32>
      %18 = vector.broadcast %17 : vector<1x128xf32> to vector<16x128xf32>
      %19 = arith.addf %16, %18 : vector<16x128xf32>
      %c0_13 = arith.constant 0 : index
      %c0_14 = arith.constant 0 : index
      %20 = vector.load %arg6[%c0_13, %c0_14] : memref<16x128xf32, #tpu.memory_space<vmem>>, vector<16x128xf32>
      tpu.vector_store %arg6[%c0_13, %c0_14], %19 {strides = array<i32>} : memref<16x128xf32, #tpu.memory_space<vmem>>, vector<16x128xf32>,
    } else {
    }
    return
  }
  func.func @transform_0(%arg0: i32, %arg1: i32, %arg2: i32) -> (i32, i32) {
    %c0_i32 = arith.constant 0 : i32
    %c0_i32_0 = arith.constant 0 : i32
    return %arg0, %c0_i32 : i32, i32
  }
  func.func @transform_1(%arg0: i32, %arg1: i32, %arg2: i32) -> (i32, i32) {
    %c0_i32 = arith.constant 0 : i32
    return %arg2, %arg1 : i32, i32
  }
  func.func @transform_2(%arg0: i32, %arg1: i32, %arg2: i32) -> (i32, i32) {
    %c0_i32 = arith.constant 0 : i32
    %c0_i32_0 = arith.constant 0 : i32
    return %c0_i32, %arg1 : i32, i32
  }
  func.func @transform_3(%arg0: i32, %arg1: i32, %arg2: i32) -> (i32, i32) {
    %c0_i32 = arith.constant 0 : i32
    return %arg0, %arg1 : i32, i32
  }
}

</mosaic_0001>

<llo_original>
// kernel: output_layer_matmul.1
$region0: #{output_layer_matmul.1}
  #allocation0 [shape = 'u32[]', space=smem, size = 0x4, offset = 0x4, fixed_abs, tag = 'smem constant byte address 0x4 - core index']
  #allocation1 [shape = 'u32[72,128]{1,0:T(1,128)}', space=vmem, size = 0x9000, scoped, tag = 'internal scratch']
  %s0 = inlined_call_operand.vmem [shape: f32[16,128], index: 0, kind: input, shape index: {}]
  %s1 = inlined_call_operand.hbm [shape: bf16[128,256], index: 1, kind: input, shape index: {}]
  %s2 = inlined_call_operand.vmem [shape: f32[1,256], index: 2, kind: input, shape index: {}]
  %s3 = inlined_call_operand.hbm [shape: f32[16,256], index: 3, kind: output, shape index: {}]
  %s4 = sld [smem:[#allocation0]]
  $region57: #{output_layer_matmul.1} parent=0
    _
  %s6 = ssub.s32 1, %s4
  %s7 = scalar_select 0, %s6, %s4
  $region1: #{output_layer_matmul.1} parent=0
    #allocation2 [shape = 'u8[65536]{0}', space=vmem, size = 0x10000, scoped, tag = 'input window, operand 1']
    #allocation3 [shape = 's32[2]{0}', space=sflag, size = 0x8, scoped, tag = 'scoped memory for output_layer_matmul.1']
    #allocation4 [shape = 's32[2]{0}', space=sflag, size = 0x8, scoped, tag = 'scoped memory for output_layer_matmul.1']
    #allocation5 [shape = 'u8[16384]{0}', space=vmem, size = 0x4000, scoped, tag = 'output window, operand 0']
    %8 = vsyncpa [#allocation3], 0
    %s9 = scalar_lea.sflag [#allocation3], 1
    %10 = vsyncpa %s9, 0
    %11 = vsyncpa [#allocation4], 0
    %s12 = scalar_lea.sflag [#allocation4], 1
    %13 = vsyncpa %s12, 0
    loop: start=0, step=1, limit=4
    $region2: #{output_layer_matmul.1} parent=1 // loop_pre_header
      _
    $region3: #{output_layer_matmul.1} parent=1 // loop_header
      %s15 = sphi 0, %s19
      %p16 = scmp.ge.s32.totalorder %s15, 4
      %s22 = sphi 0, %s41
      %s23 = sphi 0, %s37
      %s24 = sphi 0, %s33
      %s25 = sphi 0, %s22
      %s26 = sphi 0, %s23
      %s27 = sphi 0, %s24
      %s28 = sphi 0, %s25
      %s29 = sphi 0, %s26
      %s30 = sphi 0, %s27
      %s44 = sphi 0, %s46
      %s47 = sphi 0, %s44
      %s48 = sphi 0, %s47
      %s64 = sphi 0, %s48
      %s72 = sphi 0, %s74
      %s75 = sphi 0, %s72
      %s76 = sphi 0, %s75
      %s92 = sphi 0, %s76
      %s98 = sphi 0, %s100
      %s101 = sphi 0, %s98
      %s102 = sphi 0, %s101
      %s118 = sphi 0, %s102
      %s126 = sphi 0, %s128
      %s129 = sphi 0, %s126
      %s130 = sphi 0, %s129
      %s146 = sphi 0, %s130
    $region4: #{output_layer_matmul.1} parent=1 // loop_header_branch
      %18 = sbr.rel (%p16) target = $region8
    $region5: #{output_layer_matmul.1} parent=1 // loop_body
      %s20 = ssub.s32 %s15, 1
      %s21 = ssub.s32 %s15, 2
      %s31 = sadd.s32 1, %s24
      %p32 = scmp.ge.s32.totalorder %s31, 1
      %s33 = scalar_select %p32, 0, %s31
      %s34 = sadd.s32 1, %s23
      %s35 = scalar_select %p32, %s34, %s23
      %p36 = scmp.ge.s32.totalorder %s35, 2
      %s37 = scalar_select %p36, 0, %s35
      %s38 = sadd.s32 1, %s22
      %s39 = scalar_select %p36, %s38, %s22
      %p40 = scmp.ge.s32.totalorder %s39, 1
      %s41 = scalar_select %p40, 0, %s39
      %s42 = ssub.s32 %s22, %s41
      %p43 = scmp.eq.s32.totalorder %s42, 0
      %s45 = sadd.s32 %s44, 1
      %s46 = scalar_select %p43, %s44, %s45
      %p49 = pneg %p43
      %p50 = scmp.eq.s32.totalorder %s15, 1
      %p51 = por %p49, %p50
      %p52 = scmp.ne.s32.totalorder %s44, %s47
      %p53 = scmp.eq.s32.totalorder %s15, 0
      %p54 = por %p52, %p53
      %p55 = scmp.ne.s32.totalorder %s44, %s47
      %p56 = scmp.eq.s32.totalorder %s20, 1
      %p57 = por %p55, %p56
      %p58 = scmp.ne.s32.totalorder %s47, %s48
      %p59 = scmp.eq.s32.totalorder %s20, 0
      %p60 = por %p58, %p59
      %p61 = scmp.ne.s32.totalorder %s47, %s48
      %p62 = scmp.eq.s32.totalorder %s21, 1
      %p63 = por %p61, %p62
      %p65 = scmp.ne.s32.totalorder %s48, %s64
      %p66 = scmp.eq.s32.totalorder %s21, 0
      %p67 = por %p65, %p66
      %s68 = ssub.s32 %s24, %s33
      %s69 = ssub.s32 %s23, %s37
      %s70 = sor.u32 %s68, %s69
      %p71 = scmp.eq.s32.totalorder %s70, 0
      %s73 = sadd.s32 %s72, 1
      %s74 = scalar_select %p71, %s72, %s73
      %p77 = pneg %p71
      %p78 = scmp.eq.s32.totalorder %s15, 1
      %p79 = por %p77, %p78
      %p80 = scmp.ne.s32.totalorder %s72, %s75
      %p81 = scmp.eq.s32.totalorder %s15, 0
      %p82 = por %p80, %p81
      %p83 = scmp.ne.s32.totalorder %s72, %s75
      %p84 = scmp.eq.s32.totalorder %s20, 1
      %p85 = por %p83, %p84
      %p86 = scmp.ne.s32.totalorder %s75, %s76
      %p87 = scmp.eq.s32.totalorder %s20, 0
      %p88 = por %p86, %p87
      %p89 = scmp.ne.s32.totalorder %s75, %s76
      %p90 = scmp.eq.s32.totalorder %s21, 1
      %p91 = por %p89, %p90
      %p93 = scmp.ne.s32.totalorder %s76, %s92
      %p94 = scmp.eq.s32.totalorder %s21, 0
      %p95 = por %p93, %p94
      %s96 = ssub.s32 %s23, %s37
      %p97 = scmp.eq.s32.totalorder %s96, 0
      %s99 = sadd.s32 %s98, 1
      %s100 = scalar_select %p97, %s98, %s99
      %p103 = pneg %p97
      %p104 = scmp.eq.s32.totalorder %s15, 1
      %p105 = por %p103, %p104
      %p106 = scmp.ne.s32.totalorder %s98, %s101
      %p107 = scmp.eq.s32.totalorder %s15, 0
      %p108 = por %p106, %p107
      %p109 = scmp.ne.s32.totalorder %s98, %s101
      %p110 = scmp.eq.s32.totalorder %s20, 1
      %p111 = por %p109, %p110
      %p112 = scmp.ne.s32.totalorder %s101, %s102
      %p113 = scmp.eq.s32.totalorder %s20, 0
      %p114 = por %p112, %p113
      %p115 = scmp.ne.s32.totalorder %s101, %s102
      %p116 = scmp.eq.s32.totalorder %s21, 1
      %p117 = por %p115, %p116
      %p119 = scmp.ne.s32.totalorder %s102, %s118
      %p120 = scmp.eq.s32.totalorder %s21, 0
      %p121 = por %p119, %p120
      %s122 = ssub.s32 %s22, %s41
      %s123 = ssub.s32 %s23, %s37
      %s124 = sor.u32 %s122, %s123
      %p125 = scmp.eq.s32.totalorder %s124, 0
      %s127 = sadd.s32 %s126, 1
      %s128 = scalar_select %p125, %s126, %s127
      %p131 = pneg %p125
      %p132 = scmp.eq.s32.totalorder %s15, 1
      %p133 = por %p131, %p132
      %p134 = scmp.ne.s32.totalorder %s126, %s129
      %p135 = scmp.eq.s32.totalorder %s15, 0
      %p136 = por %p134, %p135
      %p137 = scmp.ne.s32.totalorder %s126, %s129
      %p138 = scmp.eq.s32.totalorder %s20, 1
      %p139 = por %p137, %p138
      %p140 = scmp.ne.s32.totalorder %s129, %s130
      %p141 = scmp.eq.s32.totalorder %s20, 0
      %p142 = por %p140, %p141
      %p143 = scmp.ne.s32.totalorder %s129, %s130
      %p144 = scmp.eq.s32.totalorder %s21, 1
      %p145 = por %p143, %p144
      %p147 = scmp.ne.s32.totalorder %s130, %s146
      %p148 = scmp.eq.s32.totalorder %s21, 0
      %p149 = por %p147, %p148
      %p150 = scmp.le.s32.totalorder 1, %s15
      %p151 = scmp.lt.s32.totalorder %s15, 3
      %p152 = pnand %p150, %p151
      %p153 = pneg %p152
      // Predicated region
      $region9: #{output_layer_matmul.1} parent=5 // pred_check
        _
      $region10: #{output_layer_matmul.1} parent=5 // pred_check_branch
        %155 = sbr.rel (%p152) target = $region12
      $region11: #{output_layer_matmul.1} parent=5 // pred_region
        %s156 = ssub.s32 %s15, 1
        // Predicated region
        $region13: #{output_layer_matmul.1} parent=11 // pred_check
          %p157 = pneg %p60
        $region14: #{output_layer_matmul.1} parent=11 // pred_check_branch
          %159 = sbr.rel (%p157) target = $region16
        $region15: #{output_layer_matmul.1} parent=11 // pred_region
          %s160 = smul.u32 2, %s25
          %p161 = scmp.lt.s32.totalorder %s160, 1
          %s162 = scalar_select %p161, %s160, 1
          %s163 = smul.addr %s162, 8
          %s164 = scalar_lea.vmem %s0, %s163
          %s165 = smul.u32 2, %s25
        $region16: #{output_layer_matmul.1} parent=11 // pred_fallthru
          _
      $region12: #{output_layer_matmul.1} parent=5 // pred_fallthru
        _
      %p166 = scmp.lt.s32.totalorder %s15, 2
      // Predicated region
      $region17: #{output_layer_matmul.1} parent=5 // pred_check
        %p167 = pneg %p166
      $region18: #{output_layer_matmul.1} parent=5 // pred_check_branch
        %169 = sbr.rel (%p167) target = $region20
      $region19: #{output_layer_matmul.1} parent=5 // pred_region
        // Predicated region
        $region21: #{output_layer_matmul.1} parent=19 // pred_check
          %p170 = pneg %p82
        $region22: #{output_layer_matmul.1} parent=19 // pred_check_branch
          %172 = sbr.rel (%p170) target = $region24
        $region23: #{output_layer_matmul.1} parent=19 // pred_region
          %s173 = sand.u32 %s72, 1
          %s174 = scalar_lea.sflag [#allocation3], %s173
          %s175 = sand.u32 %s72, 1
          %s176 = smul.addr %s175, 64
          %s177 = scalar_lea.vmem [#allocation2], %s176
          %s178 = smul.u32 16, %s24
          %180 = vsyncadd %s174, 0
          %s181 = smul.addr %s178, 2
          %s182 = sadd.s32 %s23, %s181
          %s183 = smul.addr %s182, 4
          %s184 = scalar_lea.hbm %s1, %s183
          %s185 = sshll.u32 %s184, 4
          %s186 = int_to_ptr.hbm [resolvable:$true] %s185
          %s187 = sshll.u32 %s177, 4
          %s188 = int_to_ptr.vmem [resolvable:$true] %s187
          %193 = dma.hbm_to_vmem [thread:$0]  %s186, 1024, %s188, %s174, 128, 64, 4
        $region24: #{output_layer_matmul.1} parent=19 // pred_fallthru
          _
        // Predicated region
        $region25: #{output_layer_matmul.1} parent=19 // pred_check
          %p194 = pneg %p108
        $region26: #{output_layer_matmul.1} parent=19 // pred_check_branch
          %196 = sbr.rel (%p194) target = $region28
        $region27: #{output_layer_matmul.1} parent=19 // pred_region
          %p197 = scmp.lt.s32.totalorder %s23, 1
          %s198 = scalar_select %p197, %s23, 1
          %s199 = scalar_lea.vmem %s2, %s198
        $region28: #{output_layer_matmul.1} parent=19 // pred_fallthru
          _
      $region20: #{output_layer_matmul.1} parent=5 // pred_fallthru
        _
      %p200 = scmp.le.s32.totalorder 1, %s15
      %p201 = scmp.lt.s32.totalorder %s15, 3
      %p202 = pnand %p200, %p201
      %p203 = pneg %p202
      // Predicated region
      $region29: #{output_layer_matmul.1} parent=5 // pred_check
        _
      $region30: #{output_layer_matmul.1} parent=5 // pred_check_branch
        %205 = sbr.rel (%p202) target = $region32
      $region31: #{output_layer_matmul.1} parent=5 // pred_region
        %s206 = ssub.s32 %s15, 1
        %s207 = sand.u32 %s75, 1
        %s208 = scalar_lea.sflag [#allocation3], %s207
        %s209 = sand.u32 %s75, 1
        %s210 = smul.addr %s209, 64
        %s211 = scalar_lea.vmem [#allocation2], %s210
        // Predicated region
        $region33: #{output_layer_matmul.1} parent=31 // pred_check
          %p212 = pneg %p88
        $region34: #{output_layer_matmul.1} parent=31 // pred_check_branch
          %214 = sbr.rel (%p212) target = $region36
        $region35: #{output_layer_matmul.1} parent=31 // pred_region
          %216 = dma.done %s208, 1024
        $region36: #{output_layer_matmul.1} parent=31 // pred_fallthru
          _
        %s217 = smul.u32 2, %s25
        %p218 = scmp.lt.s32.totalorder %s217, 1
        %s219 = scalar_select %p218, %s217, 1
        %s220 = smul.addr %s219, 8
        %s221 = scalar_lea.vmem %s0, %s220
        %p222 = pneg %p60
        %p223 = pneg %p57
        %s224 = sand.u32 %s75, 1
        %s225 = scalar_lea.sflag [#allocation3], %s224
        %s226 = sand.u32 %s75, 1
        %s227 = smul.addr %s226, 64
        %s228 = scalar_lea.vmem [#allocation2], %s227
        %p229 = pneg %p88
        %p230 = pneg %p85
        %p231 = scmp.lt.s32.totalorder %s26, 1
        %s232 = scalar_select %p231, %s26, 1
        %s233 = scalar_lea.vmem %s2, %s232
        %p234 = pneg %p114
        %p235 = pneg %p111
        %p236 = pneg %p142
        %p237 = pneg %p139
        %s238 = sand.u32 %s129, 1
        %s239 = scalar_lea.sflag [#allocation4], %s238
        %s240 = sand.u32 %s129, 1
        %s241 = smul.addr %s240, 16
        %s242 = scalar_lea.vmem [#allocation5], %s241
        %s243 = smul.u32 2, %s25
        %p244 = scmp.lt.s32.totalorder %s243, 1
        %s245 = scalar_select %p244, %s243, 1
        %s246 = smul.addr %s245, 8
        %s247 = scalar_lea.vmem %s0, %s246
        %s248 = smul.u32 2, %s25
        %s249 = smul.u32 16, %s27
        %p250 = scmp.lt.s32.totalorder %s26, 1
        %s251 = scalar_select %p250, %s26, 1
        %s252 = scalar_lea.vmem %s2, %s251
        %s253 = smul.u32 2, %s25
        %p254 = scmp.eq.s32.totalorder %s27, 0
        // Predicated region
        $region37: #{output_layer_matmul.1} parent=31 // pred_check
          %p255 = pneg %p254
        $region38: #{output_layer_matmul.1} parent=31 // pred_check_branch
          %257 = sbr.rel (%p255) target = $region40
        $region39: #{output_layer_matmul.1} parent=31 // pred_region
          %258 = vst [vmem:[%s242] sm:$0xff] 0.0
          %259 = vst [vmem:[%s242 + $0x8] sm:$0xff] 0.0
        $region40: #{output_layer_matmul.1} parent=31 // pred_fallthru
          _
        %s260 = smul.u32 %s27, 128
        %s261 = sshra.s32 %s260, 7
        %s262 = sand.u32 %s260, 127
        %s263 = scalar_lea.vmem %s247, %s261
        %v264 = vld [vmem:[%s263] sm:$0xff]
        %v265 = vld [vmem:[%s263 + $0x8] sm:$0xff]
        %v266 = vpack.c.bf16 %v265, %v264
        %v267 = vld [vmem:[%s242] sm:$0xff]
        %v268 = vld [vmem:[%s242 + $0x8] sm:$0xff]
        %v269 = vld [vmem:[%s211] sm:$0xf]
        %v270 = vld [vmem:[%s211 + $0x4] sm:$0xf]
        %v271 = vld [vmem:[%s211 + $0x8] sm:$0xf]
        %v272 = vld [vmem:[%s211 + $0xc] sm:$0xf]
        %v273 = vld [vmem:[%s211 + $0x10] sm:$0xf]
        %v274 = vld [vmem:[%s211 + $0x14] sm:$0xf]
        %v275 = vld [vmem:[%s211 + $0x18] sm:$0xf]
        %v276 = vld [vmem:[%s211 + $0x1c] sm:$0xf]
        %v277 = vld [vmem:[%s211 + $0x20] sm:$0xf]
        %v278 = vld [vmem:[%s211 + $0x24] sm:$0xf]
        %v279 = vld [vmem:[%s211 + $0x28] sm:$0xf]
        %v280 = vld [vmem:[%s211 + $0x2c] sm:$0xf]
        %v281 = vld [vmem:[%s211 + $0x30] sm:$0xf]
        %v282 = vld [vmem:[%s211 + $0x34] sm:$0xf]
        %v283 = vld [vmem:[%s211 + $0x38] sm:$0xf]
        %v284 = vld [vmem:[%s211 + $0x3c] sm:$0xf]
        %v301 = vunpack.c.l.b16 %v269
        %v302 = vunpack.c.l.b16 %v270
        %v303 = vunpack.c.l.b16 %v271
        %v304 = vunpack.c.l.b16 %v272
        %v305 = vunpack.c.l.b16 %v273
        %v306 = vunpack.c.l.b16 %v274
        %v307 = vunpack.c.l.b16 %v275
        %v308 = vunpack.c.l.b16 %v276
        %v309 = vunpack.c.l.b16 %v277
        %v310 = vunpack.c.l.b16 %v278
        %v311 = vunpack.c.l.b16 %v279
        %v312 = vunpack.c.l.b16 %v280
        %v313 = vunpack.c.l.b16 %v281
        %v314 = vunpack.c.l.b16 %v282
        %v315 = vunpack.c.l.b16 %v283
        %v316 = vunpack.c.l.b16 %v284
        %v317 = vpack.c.b16 %v302, %v301
        %v318 = vpack.c.b16 %v304, %v303
        %v319 = vpack.c.b16 %v306, %v305
        %v320 = vpack.c.b16 %v308, %v307
        %v321 = vpack.c.b16 %v310, %v309
        %v322 = vpack.c.b16 %v312, %v311
        %v323 = vpack.c.b16 %v314, %v313
        %v324 = vpack.c.b16 %v316, %v315
        %333 = vmatpush.bf16.msra.mxu0 %v324
        %334 = vmatpush.bf16.msra.mxu0 %v323
        %335 = vmatpush.bf16.msra.mxu0 %v322
        %336 = vmatpush.bf16.msra.mxu0 %v321
        %337 = vmatpush.bf16.msra.mxu0 %v320
        %338 = vmatpush.bf16.msra.mxu0 %v319
        %339 = vmatpush.bf16.msra.mxu0 %v318
        %340 = vmatpush.bf16.msra.mxu0 %v317
        %341 = vmatmul.bf16.gmra.mxu0 %v266
        %v342 = vpop.f32.mrf.mxu0
        %v343 = vadd.f32 0.0, %v342
        %v344 = vpop.f32.mrf.mxu0
        %v345 = vadd.f32 0.0, %v344
        %346 = vdwg.mxu0
        %v347 = vadd.f32 %v267, %v343
        %v348 = vadd.f32 %v268, %v345
        %349 = vst [vmem:[%s242] sm:$0xff] %v347
        %350 = vst [vmem:[%s242 + $0x8] sm:$0xff] %v348
        // Predicated region
        $region41: #{output_layer_matmul.1} parent=31 // pred_check
          %p351 = pneg %p254
        $region42: #{output_layer_matmul.1} parent=31 // pred_check_branch
          %353 = sbr.rel (%p351) target = $region44
        $region43: #{output_layer_matmul.1} parent=31 // pred_region
          %v354 = vld [vmem:[%s242] sm:$0xff]
          %v355 = vld [vmem:[%s242 + $0x8] sm:$0xff]
          %v356 = vld [vmem:[%s252] sm:$0x1]
          %v358 = vperm.slane %v356, 0
          %v360 = vadd.f32 %v354, %v358
          %v361 = vadd.f32 %v355, %v358
          %362 = vst [vmem:[%s242] sm:$0xff] %v360
          %363 = vst [vmem:[%s242 + $0x8] sm:$0xff] %v361
        $region44: #{output_layer_matmul.1} parent=31 // pred_fallthru
          _
        %s364 = sand.u32 %s129, 1
        %s365 = scalar_lea.sflag [#allocation4], %s364
        %s366 = sand.u32 %s129, 1
        %s367 = smul.addr %s366, 16
        %s368 = scalar_lea.vmem [#allocation5], %s367
        // Predicated region
        $region45: #{output_layer_matmul.1} parent=31 // pred_check
          %p369 = pneg %p139
        $region46: #{output_layer_matmul.1} parent=31 // pred_check_branch
          %371 = sbr.rel (%p369) target = $region48
        $region47: #{output_layer_matmul.1} parent=31 // pred_region
          %s372 = smul.u32 2, %s25
          %374 = vsyncadd %s365, 0
          %s375 = smul.addr %s372, 2
          %s376 = sadd.s32 %s26, %s375
          %s377 = smul.addr %s376, 8
          %s378 = scalar_lea.hbm %s3, %s377
          %s379 = sshll.u32 %s368, 4
          %s380 = int_to_ptr.vmem [resolvable:$true] %s379
          %s381 = sshll.u32 %s378, 4
          %s382 = int_to_ptr.hbm [resolvable:$true] %s381
          %387 = dma.vmem_to_hbm [thread:$0]  %s380, 256, %s382, %s365, 128, 256, 8
        $region48: #{output_layer_matmul.1} parent=31 // pred_fallthru
          _
      $region32: #{output_layer_matmul.1} parent=5 // pred_fallthru
        _
      %p388 = scmp.le.s32.totalorder 2, %s15
      // Predicated region
      $region49: #{output_layer_matmul.1} parent=5 // pred_check
        %p389 = pneg %p388
      $region50: #{output_layer_matmul.1} parent=5 // pred_check_branch
        %391 = sbr.rel (%p389) target = $region52
      $region51: #{output_layer_matmul.1} parent=5 // pred_region
        %s392 = ssub.s32 %s15, 2
        // Predicated region
        $region53: #{output_layer_matmul.1} parent=51 // pred_check
          %p393 = pneg %p145
        $region54: #{output_layer_matmul.1} parent=51 // pred_check_branch
          %395 = sbr.rel (%p393) target = $region56
        $region55: #{output_layer_matmul.1} parent=51 // pred_region
          %s396 = sand.u32 %s130, 1
          %s397 = scalar_lea.sflag [#allocation4], %s396
          %s398 = sand.u32 %s130, 1
          %s399 = smul.addr %s398, 16
          %s400 = scalar_lea.vmem [#allocation5], %s399
          %402 = dma.done %s397, 256
        $region56: #{output_layer_matmul.1} parent=51 // pred_fallthru
          _
      $region52: #{output_layer_matmul.1} parent=5 // pred_fallthru
        _
    $region6: #{output_layer_matmul.1} parent=1 // loop_footer
      %s19 = sadd.s32 1, %s15
    $region7: #{output_layer_matmul.1} parent=1 // loop_footer_branch
      %14 = sbr.rel target = $region3
    $region8: #{output_layer_matmul.1} parent=1 // loop_exit
      _
    %403 = vsyncpa [#allocation3], 1
    %s404 = scalar_lea.sflag [#allocation3], 1
    %405 = vsyncpa %s404, 1
    %406 = vsyncpa [#allocation4], 1
    %s407 = scalar_lea.sflag [#allocation4], 1
    %408 = vsyncpa %s407, 1

</llo_original>
